<compile_context>
chip_gen: v6e
topology: v6e:2x2x1
jax: 0.10.0
libtpu: 0.0.40
codegen_flags: <defaults>
</compile_context>

<pallas_src>
import functools

import jax
import jax.numpy as jnp
from jax.experimental import pallas as pl
from jax.experimental.pallas import tpu as pltpu


# ---------------------------------------------------------------------------
# small helpers
# ---------------------------------------------------------------------------
_SUBLANE = {4: 8, 2: 16, 1: 32}  # sublane multiple per element byte-width


def _sublane(dtype):
    return _SUBLANE.get(jnp.dtype(dtype).itemsize, 8)


def _round_up(x, m):
    return (x + m - 1) // m * m


def _pad_rows(x, rows):
    if x.shape[0] == rows:
        return x
    return jnp.pad(x, ((0, rows - x.shape[0]), (0, 0)))


@functools.lru_cache(maxsize=1)
def _vmem_capacity_bytes():
    """Physical VMEM of the current TPU generation (per TensorCore)."""
    try:
        return int(pltpu.get_tpu_info().vmem_capacity_bytes)
    except Exception:
        return 64 << 20  # conservative fallback: v7x per-TC physical VMEM


def _block_budget_bytes():
    """Double-buffered block budget, sized per generation."""
    cap = _vmem_capacity_bytes()
    if cap >= (96 << 20):        # v5e / v6e: 128 MiB physical VMEM
        return 56 << 20
    return 24 << 20              # v7x: 64 MiB physical -> keep Mosaic headroom


def _block_footprint(tb, tn, K, w_bytes, x_bytes, o_bytes):
    per_step = (K * tn * w_bytes        # weight block
                + tn * w_bytes          # bias block
                + tb * K * x_bytes      # x block
                + tb * tn * o_bytes)    # output block
    return 2 * per_step                 # double-buffered


def _pick_tiles(B, K, Fp, x_dtype, w_dtype):
    """(tb, B_pad, tn): largest tiles whose double-buffered blocks fit budget."""
    sub = max(_sublane(x_dtype), _sublane(w_dtype))
    tb0 = min(_round_up(B, sub), 256)   # feed the MXU up to 256-row LHS tiles
    B_pad = _round_up(B, tb0)
    w_bytes = jnp.dtype(w_dtype).itemsize
    x_bytes = jnp.dtype(x_dtype).itemsize
    budget = _block_budget_bytes()

    tb_cands = [tb0]
    t = tb0 // 2
    while t >= sub and t % sub == 0:
        tb_cands.append(t)
        t //= 2

    tn_cands = [Fp] + [t for t in range((Fp // 128) * 128, 127, -128)
                       if t != Fp and Fp % t == 0]

    for tb in tb_cands:                 # prefer large batch tiles ...
        for tn in tn_cands:             # ... and the largest F_out tile that fits
            if _block_footprint(tb, tn, K, w_bytes, x_bytes, w_bytes) <= budget:
                return tb, B_pad, tn
    # TODO(synk): add K tiling + f32 accumulator for pathologically large F_in.
    return tb_cands[-1], B_pad, tn_cands[-1]


def _vmem_limit_bytes(tb, tn, K, x_dtype, w_dtype):
    w_bytes = jnp.dtype(w_dtype).itemsize
    x_bytes = jnp.dtype(x_dtype).itemsize
    fp = _block_footprint(tb, tn, K, w_bytes, x_bytes, w_bytes)
    hard_cap = _vmem_capacity_bytes() - (4 << 20)   # never request all of VMEM
    return int(min(hard_cap, max(32 << 20, fp + (8 << 20))))


# ---------------------------------------------------------------------------
# parameters
# ---------------------------------------------------------------------------
def init_params(key, in_features, out_features, ensemble_size,
                dtype=jnp.float32):
    """Matches PyTorch: xavier_normal_(gain=1) weights, zero biases.

    Weights stored pre-transposed as (E, F_in, F_out); biases (E, 1, F_out).
    Use dtype=jnp.bfloat16 to halve HBM weight traffic on the weight-streaming
    bound branches (the MXU still accumulates in f32).
    """
    std = (2.0 / (in_features + out_features)) ** 0.5
    k1, k2 = jax.random.split(key)
    w_base = (std * jax.random.normal(
        k1, (ensemble_size, in_features, out_features), jnp.float32)).astype(dtype)
    w_prior = (std * jax.random.normal(
        k2, (ensemble_size, in_features, out_features), jnp.float32)).astype(dtype)
    b_base = jnp.zeros((ensemble_size, 1, out_features), dtype)
    b_prior = jnp.zeros((ensemble_size, 1, out_features), dtype)
    return w_base, b_base, w_prior, b_prior


def fuse_params(params, prior_scale=1.0, posterior_scale=1.0):
    """One-time fusion: scales folded into weights, base/prior concatenated
    along the contraction dim, F_out zero-padded to a lane multiple (128).

    Returns (w_eff, b_eff, out_features):
      w_eff: (E, K, Fp)  with K = 2*F_in if prior_scale > 0 else F_in,
                              Fp = round_up(F_out, 128)
      b_eff: (E, 1, Fp)
    so that member k's output is  x_eff @ w_eff[k] + b_eff[k]  with
      x_eff = concat([x, px], -1)   (prior on)
      x_eff = x                     (prior off).
    When prior_scale <= 0 the prior model does not exist and NO scaling is
    applied, mirroring the PyTorch `if self.prior_scale > 0` guard.
    """
    w_base, b_base, w_prior, b_prior = params
    dt = w_base.dtype
    F_out = w_base.shape[-1]
    if prior_scale > 0:
        # Fold the output scales into the weights/biases once (no per-call
        # activation scaling needed).
        w_eff = jnp.concatenate(
            [(posterior_scale * w_base.astype(jnp.float32)).astype(dt),
             (prior_scale * w_prior.astype(jnp.float32)).astype(dt)], axis=1)
        b_eff = (posterior_scale * b_base.astype(jnp.float32)
                 + prior_scale * b_prior.astype(jnp.float32)).astype(dt)
    else:
        w_eff, b_eff = w_base, b_base
    Fp = _round_up(F_out, 128)
    if Fp != F_out:
        # Lane-pad so every kernel writes unmasked, lane-dense stores.
        # TODO(synk): for tiny F_out with many members, pack members along the
        # lane dim instead of zero-padding each member to 128 lanes.
        w_eff = jnp.pad(w_eff, ((0, 0), (0, 0), (0, Fp - F_out)))
        b_eff = jnp.pad(b_eff, ((0, 0), (0, 0), (0, Fp - F_out)))
    return w_eff, b_eff, F_out


def _effective_x(logits, prior_logits, prior_scale, w_dtype):
    # TODO(synk): for very large B, pass logits / prior_logits separately and do
    # two accumulating dots in-kernel to avoid materializing the (B, 2*F_in)
    # concat in HBM.
    if prior_scale > 0:
        x = jnp.concatenate([logits, prior_logits], axis=-1)
    else:
        x = logits
    return x.astype(w_dtype)


# ---------------------------------------------------------------------------
# kernels
# ---------------------------------------------------------------------------
def _member_matmul_kernel(x_ref, w_ref, b_ref, o_ref):
    # x: (tb, K); w: (K, tn); b: (1, tn); o: (tb, tn) lane-dense.
    o_ref[...] = (jnp.dot(x_ref[...], w_ref[...],
                          preferred_element_type=jnp.float32)
                  + b_ref[...]).astype(o_ref.dtype)


def _single_member_kernel(idx_ref, x_ref, w_ref, b_ref, o_ref):
    del idx_ref  # only used by the index_maps to gather the selected member
    _member_matmul_kernel(x_ref, w_ref, b_ref, o_ref)


def _per_sample_kernel(ids_ref, x_ref, w_ref, b_ref, o_ref):
    # grid = (nb, nj, E); E innermost/"arbitrary" keeps the output tile resident.
    e = pl.program_id(2)

    @pl.when(e == 0)
    def _():
        o_ref[...] = jnp.zeros_like(o_ref)

    val = (jnp.dot(x_ref[...], w_ref[...], preferred_element_type=jnp.float32)
           + b_ref[...]).astype(o_ref.dtype)
    sel = ids_ref[...] == e                     # (tb, 1) broadcasts across lanes
    o_ref[...] = jnp.where(sel, val, o_ref[...])


# ---------------------------------------------------------------------------
# pallas_call wrappers
# ---------------------------------------------------------------------------
def ensemble_all_members(x_eff, fused):
    """(B, E, F_out): every ensemble member applied to the whole batch."""
    w_eff, b_eff, F_out = fused
    E, K, Fp = w_eff.shape
    B = x_eff.shape[0]
    tb, B_pad, tn = _pick_tiles(B, K, Fp, x_eff.dtype, w_eff.dtype)
    xp = _pad_rows(x_eff, B_pad)
    nb, nj = B_pad // tb, Fp // tn

    w_bytes = jnp.dtype(w_eff.dtype).itemsize
    x_bytes = jnp.dtype(x_eff.dtype).itemsize
    ce = pl.CostEstimate(
        flops=2 * E * B_pad * K * Fp, transcendentals=0,
        bytes_accessed=int(nb * (w_eff.size + b_eff.size) * w_bytes
                           + xp.size * x_bytes + B_pad * E * Fp * w_bytes))
    cp = pltpu.CompilerParams(
        dimension_semantics=("parallel", "parallel", "parallel"),
        vmem_limit_bytes=_vmem_limit_bytes(tb, tn, K, x_eff.dtype, w_eff.dtype))

    out = pl.pallas_call(
        _member_matmul_kernel,
        out_shape=jax.ShapeDtypeStruct((B_pad, E * Fp), w_eff.dtype),
        grid_spec=pltpu.PrefetchScalarGridSpec(
            num_scalar_prefetch=0, grid=(nb, E, nj),
            in_specs=[
                pl.BlockSpec((tb, K), lambda bi, e, j: (bi, 0)),          # x
                pl.BlockSpec((None, K, tn), lambda bi, e, j: (e, 0, j)),  # W[e]
                pl.BlockSpec((None, 1, tn), lambda bi, e, j: (e, 0, j)),  # b[e]
            ],
            out_specs=pl.BlockSpec((tb, tn), lambda bi, e, j: (bi, e * nj + j)),
        ),
        compiler_params=cp,
        cost_estimate=ce,
    )(xp, w_eff, b_eff)
    # lane-dense (B_pad, E*Fp) slab: free reshape, slice off batch/lane padding
    return out[:B].reshape(B, E, Fp)[..., :F_out]


def ensemble_single_member(x_eff, fused, member_index):
    """(B, F_out): one selected member; only its weights are DMA'd (prefetch)."""
    w_eff, b_eff, F_out = fused
    E, K, Fp = w_eff.shape
    B = x_eff.shape[0]
    tb, B_pad, tn = _pick_tiles(B, K, Fp, x_eff.dtype, w_eff.dtype)
    xp = _pad_rows(x_eff, B_pad)
    nb, nj = B_pad // tb, Fp // tn

    idx = jnp.asarray(member_index, jnp.int32).reshape((1,))

    w_bytes = jnp.dtype(w_eff.dtype).itemsize
    x_bytes = jnp.dtype(x_eff.dtype).itemsize
    ce = pl.CostEstimate(
        flops=2 * B_pad * K * Fp, transcendentals=0,
        bytes_accessed=int(nb * (K + 1) * Fp * w_bytes
                           + xp.size * x_bytes + B_pad * Fp * w_bytes))
    cp = pltpu.CompilerParams(
        dimension_semantics=("parallel", "parallel"),
        vmem_limit_bytes=_vmem_limit_bytes(tb, tn, K, x_eff.dtype, w_eff.dtype))

    out = pl.pallas_call(
        _single_member_kernel,
        out_shape=jax.ShapeDtypeStruct((B_pad, Fp), w_eff.dtype),
        grid_spec=pltpu.PrefetchScalarGridSpec(
            num_scalar_prefetch=1, grid=(nb, nj),
            in_specs=[
                pl.BlockSpec((tb, K), lambda bi, j, idx_ref: (bi, 0)),
                pl.BlockSpec((None, K, tn),
                             lambda bi, j, idx_ref: (idx_ref[0], 0, j)),
                pl.BlockSpec((None, 1, tn),
                             lambda bi, j, idx_ref: (idx_ref[0], 0, j)),
            ],
            out_specs=pl.BlockSpec((tb, tn), lambda bi, j, idx_ref: (bi, j)),
        ),
        compiler_params=cp,
        cost_estimate=ce,
    )(idx, xp, w_eff, b_eff)
    return out[:B, :F_out]


def ensemble_per_sample(x_eff, fused, member_ids):
    """(B, F_out): row i uses member member_ids[i].

    Each member's weights are streamed once per batch tile; rows are selected
    with a mask while the output tile stays resident across the (innermost,
    "arbitrary") ensemble axis, so output HBM traffic is a single (B, Fp) write.
    TODO(synk): scalar-prefetch the unique member ids present in the batch
    (skip absent members), and switch to a grouped-matmul layout once B is
    large enough that the E x redundant MXU work dominates weight streaming.
    """
    w_eff, b_eff, F_out = fused
    E, K, Fp = w_eff.shape
    B = x_eff.shape[0]
    tb, B_pad, tn = _pick_tiles(B, K, Fp, x_eff.dtype, w_eff.dtype)
    xp = _pad_rows(x_eff, B_pad)
    nb, nj = B_pad // tb, Fp // tn
    # Padded rows get id 0 and receive real member-0 outputs; they are sliced
    # off by [:B] below, so this is intentional and correct.
    ids = jnp.pad(jnp.asarray(member_ids, jnp.int32), (0, B_pad - B))
    ids = ids.reshape(B_pad, 1)

    w_bytes = jnp.dtype(w_eff.dtype).itemsize
    x_bytes = jnp.dtype(x_eff.dtype).itemsize
    ce = pl.CostEstimate(
        flops=2 * E * B_pad * K * Fp, transcendentals=0,
        bytes_accessed=int(nb * (w_eff.size + b_eff.size) * w_bytes
                           + xp.size * x_bytes + B_pad * Fp * w_bytes))
    cp = pltpu.CompilerParams(
        dimension_semantics=("parallel", "parallel", "arbitrary"),
        vmem_limit_bytes=_vmem_limit_bytes(tb, tn, K, x_eff.dtype, w_eff.dtype))

    out = pl.pallas_call(
        _per_sample_kernel,
        out_shape=jax.ShapeDtypeStruct((B_pad, Fp), w_eff.dtype),
        grid_spec=pltpu.PrefetchScalarGridSpec(
            num_scalar_prefetch=0, grid=(nb, nj, E),   # E last => output resident
            in_specs=[
                pl.BlockSpec((tb, 1), lambda bi, j, e: (bi, 0)),          # ids
                pl.BlockSpec((tb, K), lambda bi, j, e: (bi, 0)),          # x
                pl.BlockSpec((None, K, tn), lambda bi, j, e: (e, 0, j)),  # W[e]
                pl.BlockSpec((None, 1, tn), lambda bi, j, e: (e, 0, j)),  # b[e]
            ],
            out_specs=pl.BlockSpec((tb, tn), lambda bi, j, e: (bi, j)),
        ),
        compiler_params=cp,
        cost_estimate=ce,
    )(ids, xp, w_eff, b_eff)
    return out[:B, :F_out]


def ensemble_layer_forward(z, logits, prior_logits, fused, prior_scale=1.0):
    """Mirrors EnsembleLayer.forward branch-for-branch (static z-shape branch).

    posterior_scale / prior_scale are already folded into `fused` by
    fuse_params; `prior_scale` here only selects whether the prior activations
    are concatenated (the PyTorch `if self.prior_scale > 0` guard).
    """
    w_eff = fused[0]
    x_eff = _effective_x(logits, prior_logits, prior_scale, w_eff.dtype)
    B = logits.shape[0]
    if z.shape[0] == 1:
        idx = jnp.argmax(z[0])                    # traced-safe (no Python int())
        out = ensemble_single_member(x_eff, fused, idx)
        return out[:, None, :]                    # (B, 1, F_out)
    elif z.ndim == 2 and z.shape[0] == B:
        ids = jnp.argmax(z, axis=1)               # (B,)
        out = ensemble_per_sample(x_eff, fused, ids)
        return out[:, None, :]                    # (B, 1, F_out)
    else:
        return ensemble_all_members(x_eff, fused)  # (B, E, F_out)


# ---------------------------------------------------------------------------
# demo / self-test
# ---------------------------------------------------------------------------
if __name__ == "__main__":
    jax.config.update("jax_default_matmul_precision", "highest")
    key = jax.random.PRNGKey(0)
    kp, kl, kpl, kz = jax.random.split(key, 4)

    def reference(z, logits, prior_logits, params, posterior_scale, prior_scale):
        w_base, b_base, w_prior, b_prior = [p.astype(jnp.float32) for p in params]
        lo = logits.astype(jnp.float32)
        plo = prior_logits.astype(jnp.float32)
        base = jnp.einsum("bf,efo->beo", lo, w_base) + b_base[:, 0][None]
        if prior_scale > 0:
            pri = jnp.einsum("bf,efo->beo", plo, w_prior) + b_prior[:, 0][None]
            allo = posterior_scale * base + prior_scale * pri
        else:
            allo = base
        B = logits.shape[0]
        if z.shape[0] == 1:
            return jnp.take(allo, jnp.argmax(z[0])[None], axis=1)
        elif z.ndim == 2 and z.shape[0] == B:
            ids = jnp.argmax(z, axis=1)
            return jnp.take_along_axis(allo, ids[:, None, None], axis=1)
        return allo

    def run_case(B, F_in, F_out, E, posterior_scale, prior_scale,
                 dtype=jnp.float32, rtol=1e-3, atol=1e-3):
        params = init_params(kp, F_in, F_out, E, dtype=dtype)
        logits = jax.random.normal(kl, (B, F_in), jnp.float32)
        prior_logits = jax.random.normal(kpl, (B, F_in), jnp.float32)
        fused = fuse_params(params, prior_scale, posterior_scale)

        # branch 3: evaluate every ensemble member -> (B, E, F_out)
        z_all = jnp.zeros((E,), jnp.float32)
        out_all = ensemble_layer_forward(z_all, logits, prior_logits, fused,
                                         prior_scale)
        ref_all = reference(z_all, logits, prior_logits, params,
                            posterior_scale, prior_scale)
        assert out_all.shape == (B, E, F_out), out_all.shape
        assert jnp.allclose(out_all.astype(jnp.float32), ref_all,
                            rtol=rtol, atol=atol)

        # branch 1: single one-hot selects one member for the whole batch
        z_one = jnp.zeros((1, E), jnp.float32).at[0, E - 1].set(1.0)
        out_one = ensemble_layer_forward(z_one, logits, prior_logits, fused,
                                         prior_scale)
        ref_one = reference(z_one, logits, prior_logits, params,
                            posterior_scale, prior_scale)
        assert out_one.shape == (B, 1, F_out), out_one.shape
        assert jnp.allclose(out_one.astype(jnp.float32), ref_one,
                            rtol=rtol, atol=atol)

        # branch 2: per-sample one-hot selection
        ids = jax.random.randint(kz, (B,), 0, E)
        z_per = jax.nn.one_hot(ids, E, dtype=jnp.float32)
        out_per = ensemble_layer_forward(z_per, logits, prior_logits, fused,
                                         prior_scale)
        ref_per = reference(z_per, logits, prior_logits, params,
                            posterior_scale, prior_scale)
        assert out_per.shape == (B, 1, F_out), out_per.shape
        assert jnp.allclose(out_per.astype(jnp.float32), ref_per,
                            rtol=rtol, atol=atol)

        jax.block_until_ready((out_all, out_one, out_per))

    # small F_out (lane-padded to 128), prior on, non-trivial scales
    run_case(B=8, F_in=32, F_out=16, E=2, posterior_scale=0.7, prior_scale=0.3)
    # lane-dense F_out, prior disabled (PyTorch applies no scaling), ragged batch
    run_case(B=6, F_in=32, F_out=128, E=3, posterior_scale=2.0, prior_scale=0.0)
    # larger batch: exercises B tiling (multiple batch-tile grid steps)
    run_case(B=260, F_in=48, F_out=256, E=4, posterior_scale=1.0, prior_scale=1.0)
    # bf16 weights/activations (halved HBM weight traffic), loose tolerance
    run_case(B=16, F_in=64, F_out=128, E=2, posterior_scale=0.5, prior_scale=0.5,
             dtype=jnp.bfloat16, rtol=1e-1, atol=1e-1)

    print("KERNEL_OK")
</pallas_src>

<mosaic_0001>
module attributes {stable_mosaic.version = 11 : i64} {
  func.func @_member_matmul_kernel(%arg0: i32, %arg1: i32, %arg2: i32, %arg3: memref<8x64xf32, #tpu.memory_space<vmem>>, %arg4: memref<1x64x128xf32, #tpu.memory_space<vmem>>, %arg5: memref<1x1x128xf32, #tpu.memory_space<vmem>>, %arg6: memref<8x128xf32, #tpu.memory_space<vmem>>) attributes {dimension_semantics = [#tpu.dimension_semantics<parallel>, #tpu.dimension_semantics<parallel>, #tpu.dimension_semantics<parallel>], iteration_bounds = array<i64: 1, 2, 1>, scalar_prefetch = 0 : i64, scratch_operands = 0 : i64, tpu.core_type = #tpu.core_type<tc>, window_params = [{transform_indices = @transform_0, window_bounds = array<i64: 8, 64>}, {transform_indices = @transform_1, window_bounds = array<i64: 1, 64, 128>}, {transform_indices = @transform_2, window_bounds = array<i64: 1, 1, 128>}, {transform_indices = @transform_3, window_bounds = array<i64: 8, 128>}]} {
    %c0 = arith.constant 0 : index
    %c0_0 = arith.constant 0 : index
    %0 = vector.load %arg3[%c0, %c0_0] : memref<8x64xf32, #tpu.memory_space<vmem>>, vector<8x64xf32>
    %c0_1 = arith.constant 0 : index
    %c0_2 = arith.constant 0 : index
    %c0_3 = arith.constant 0 : index
    %1 = vector.load %arg4[%c0_1, %c0_2, %c0_3] : memref<1x64x128xf32, #tpu.memory_space<vmem>>, vector<1x64x128xf32>
    %2 = vector.shape_cast %1 : vector<1x64x128xf32> to vector<64x128xf32>
    %cst = arith.constant dense<0.000000e+00> : vector<8x128xf32>
    %3 = tpu.matmul %0, %2, %cst {dimension_numbers = #tpu.dot_dimension_numbers<[1], [0], [0], [1], [0, 0, 1, 1], [], []>, precision = #tpu.contract_precision<fp32>} : vector<8x64xf32>, vector<64x128xf32>, vector<8x128xf32> -> vector<8x128xf32>
    %c0_4 = arith.constant 0 : index
    %c0_5 = arith.constant 0 : index
    %c0_6 = arith.constant 0 : index
    %4 = vector.load %arg5[%c0_4, %c0_5, %c0_6] : memref<1x1x128xf32, #tpu.memory_space<vmem>>, vector<1x1x128xf32>
    %5 = vector.shape_cast %4 : vector<1x1x128xf32> to vector<1x128xf32>
    %6 = vector.broadcast %5 : vector<1x128xf32> to vector<8x128xf32>
    %7 = arith.addf %3, %6 : vector<8x128xf32>
    %c0_7 = arith.constant 0 : index
    %c0_8 = arith.constant 0 : index
    %8 = vector.load %arg6[%c0_7, %c0_8] : memref<8x128xf32, #tpu.memory_space<vmem>>, vector<8x128xf32>
    tpu.vector_store %arg6[%c0_7, %c0_8], %7 {strides = array<i32>} : memref<8x128xf32, #tpu.memory_space<vmem>>, vector<8x128xf32>,
    return
  }
  func.func @transform_0(%arg0: i32, %arg1: i32, %arg2: i32) -> (i32, i32) {
    %c0_i32 = arith.constant 0 : i32
    %c0_i32_0 = arith.constant 0 : i32
    return %arg0, %c0_i32 : i32, i32
  }
  func.func @transform_1(%arg0: i32, %arg1: i32, %arg2: i32) -> (i32, i32, i32) {
    %c0_i32 = arith.constant 0 : i32
    %c0_i32_0 = arith.constant 0 : i32
    return %arg1, %c0_i32, %arg2 : i32, i32, i32
  }
  func.func @transform_2(%arg0: i32, %arg1: i32, %arg2: i32) -> (i32, i32, i32) {
    %c0_i32 = arith.constant 0 : i32
    %c0_i32_0 = arith.constant 0 : i32
    return %arg1, %c0_i32, %arg2 : i32, i32, i32
  }
  func.func @transform_3(%arg0: i32, %arg1: i32, %arg2: i32) -> (i32, i32) {
    %c1_i32 = arith.constant 1 : i32
    %0 = arith.muli %arg1, %c1_i32 : i32
    %1 = arith.addi %0, %arg2 : i32
    %c0_i32 = arith.constant 0 : i32
    return %arg0, %1 : i32, i32
  }
}

</mosaic_0001>

<llo_original>
// kernel: tpu_custom_call.1
$region0: #{tpu_custom_call.1}
  #allocation0 [shape = 'u32[]', space=smem, size = 0x4, offset = 0x4, fixed_abs, tag = 'smem constant byte address 0x4 - core index']
  #allocation1 [shape = 'u32[144,128]{1,0:T(1,128)}', space=vmem, size = 0x12000, scoped, tag = 'internal scratch']
  %s0 = inlined_call_operand.hbm [shape: f32[8,64], index: 0, kind: input, shape index: {}]
  %s1 = inlined_call_operand.hbm [shape: f32[2,64,128], index: 1, kind: input, shape index: {}]
  %s2 = inlined_call_operand.vmem [shape: f32[2,1,128], index: 2, kind: input, shape index: {}]
  %s3 = inlined_call_operand.hbm [shape: f32[8,256], index: 3, kind: output, shape index: {}]
  %s4 = sld [smem:[#allocation0]]
  $region53: #{tpu_custom_call.1} parent=0
    _
  %s6 = ssub.s32 1, %s4
  %s7 = scalar_select 0, %s6, %s4
  $region1: #{tpu_custom_call.1} parent=0
    #allocation2 [shape = 'u8[4096]{0}', space=vmem, size = 0x1000, scoped, tag = 'input window, operand 0, single buffered']
    #allocation3 [shape = 's32[2]{0}', space=sflag, size = 0x8, scoped, tag = 'scoped memory for tpu_custom_call.1']
    #allocation4 [shape = 's32[2]{0}', space=sflag, size = 0x8, scoped, tag = 'scoped memory for tpu_custom_call.1']
    #allocation5 [shape = 'u8[65536]{0}', space=vmem, size = 0x10000, scoped, tag = 'input window, operand 1']
    #allocation6 [shape = 's32[2]{0}', space=sflag, size = 0x8, scoped, tag = 'scoped memory for tpu_custom_call.1']
    #allocation7 [shape = 'u8[8192]{0}', space=vmem, size = 0x2000, scoped, tag = 'output window, operand 0']
    %8 = vsyncpa [#allocation3], 0
    %9 = vsyncpa [#allocation6], 0
    %s10 = scalar_lea.sflag [#allocation6], 1
    %11 = vsyncpa %s10, 0
    %12 = vsyncpa [#allocation4], 0
    %s13 = scalar_lea.sflag [#allocation4], 1
    %14 = vsyncpa %s13, 0
    loop: start=0, step=1, limit=4
    $region2: #{tpu_custom_call.1} parent=1 // loop_pre_header
      _
    $region3: #{tpu_custom_call.1} parent=1 // loop_header
      %s16 = sphi 0, %s20
      %p17 = scmp.ge.s32.totalorder %s16, 4
      %s23 = sphi 0, %s42
      %s24 = sphi 0, %s38
      %s25 = sphi 0, %s34
      %s26 = sphi 0, %s23
      %s27 = sphi 0, %s24
      %s28 = sphi 0, %s25
      %s29 = sphi 0, %s26
      %s30 = sphi 0, %s27
      %s31 = sphi 0, %s28
      %s45 = sphi 0, %s47
      %s48 = sphi 0, %s45
      %s49 = sphi 0, %s48
      %s65 = sphi 0, %s49
      %s73 = sphi 0, %s75
      %s76 = sphi 0, %s73
      %s77 = sphi 0, %s76
      %s93 = sphi 0, %s77
      %s101 = sphi 0, %s103
      %s104 = sphi 0, %s101
      %s105 = sphi 0, %s104
      %s121 = sphi 0, %s105
      %s131 = sphi 0, %s133
      %s134 = sphi 0, %s131
      %s135 = sphi 0, %s134
      %s151 = sphi 0, %s135
    $region4: #{tpu_custom_call.1} parent=1 // loop_header_branch
      %19 = sbr.rel (%p17) target = $region8
    $region5: #{tpu_custom_call.1} parent=1 // loop_body
      %s21 = ssub.s32 %s16, 1
      %s22 = ssub.s32 %s16, 2
      %s32 = sadd.s32 1, %s25
      %p33 = scmp.ge.s32.totalorder %s32, 1
      %s34 = scalar_select %p33, 0, %s32
      %s35 = sadd.s32 1, %s24
      %s36 = scalar_select %p33, %s35, %s24
      %p37 = scmp.ge.s32.totalorder %s36, 2
      %s38 = scalar_select %p37, 0, %s36
      %s39 = sadd.s32 1, %s23
      %s40 = scalar_select %p37, %s39, %s23
      %p41 = scmp.ge.s32.totalorder %s40, 1
      %s42 = scalar_select %p41, 0, %s40
      %s43 = ssub.s32 %s23, %s42
      %p44 = scmp.eq.s32.totalorder %s43, 0
      %s46 = sadd.s32 %s45, 1
      %s47 = scalar_select %p44, %s45, %s46
      %p50 = pneg %p44
      %p51 = scmp.eq.s32.totalorder %s16, 1
      %p52 = por %p50, %p51
      %p53 = scmp.ne.s32.totalorder %s45, %s48
      %p54 = scmp.eq.s32.totalorder %s16, 0
      %p55 = por %p53, %p54
      %p56 = scmp.ne.s32.totalorder %s45, %s48
      %p57 = scmp.eq.s32.totalorder %s21, 1
      %p58 = por %p56, %p57
      %p59 = scmp.ne.s32.totalorder %s48, %s49
      %p60 = scmp.eq.s32.totalorder %s21, 0
      %p61 = por %p59, %p60
      %p62 = scmp.ne.s32.totalorder %s48, %s49
      %p63 = scmp.eq.s32.totalorder %s22, 1
      %p64 = por %p62, %p63
      %p66 = scmp.ne.s32.totalorder %s49, %s65
      %p67 = scmp.eq.s32.totalorder %s22, 0
      %p68 = por %p66, %p67
      %s69 = ssub.s32 %s24, %s38
      %s70 = ssub.s32 %s25, %s34
      %s71 = sor.u32 %s69, %s70
      %p72 = scmp.eq.s32.totalorder %s71, 0
      %s74 = sadd.s32 %s73, 1
      %s75 = scalar_select %p72, %s73, %s74
      %p78 = pneg %p72
      %p79 = scmp.eq.s32.totalorder %s16, 1
      %p80 = por %p78, %p79
      %p81 = scmp.ne.s32.totalorder %s73, %s76
      %p82 = scmp.eq.s32.totalorder %s16, 0
      %p83 = por %p81, %p82
      %p84 = scmp.ne.s32.totalorder %s73, %s76
      %p85 = scmp.eq.s32.totalorder %s21, 1
      %p86 = por %p84, %p85
      %p87 = scmp.ne.s32.totalorder %s76, %s77
      %p88 = scmp.eq.s32.totalorder %s21, 0
      %p89 = por %p87, %p88
      %p90 = scmp.ne.s32.totalorder %s76, %s77
      %p91 = scmp.eq.s32.totalorder %s22, 1
      %p92 = por %p90, %p91
      %p94 = scmp.ne.s32.totalorder %s77, %s93
      %p95 = scmp.eq.s32.totalorder %s22, 0
      %p96 = por %p94, %p95
      %s97 = ssub.s32 %s24, %s38
      %s98 = ssub.s32 %s25, %s34
      %s99 = sor.u32 %s97, %s98
      %p100 = scmp.eq.s32.totalorder %s99, 0
      %s102 = sadd.s32 %s101, 1
      %s103 = scalar_select %p100, %s101, %s102
      %p106 = pneg %p100
      %p107 = scmp.eq.s32.totalorder %s16, 1
      %p108 = por %p106, %p107
      %p109 = scmp.ne.s32.totalorder %s101, %s104
      %p110 = scmp.eq.s32.totalorder %s16, 0
      %p111 = por %p109, %p110
      %p112 = scmp.ne.s32.totalorder %s101, %s104
      %p113 = scmp.eq.s32.totalorder %s21, 1
      %p114 = por %p112, %p113
      %p115 = scmp.ne.s32.totalorder %s104, %s105
      %p116 = scmp.eq.s32.totalorder %s21, 0
      %p117 = por %p115, %p116
      %p118 = scmp.ne.s32.totalorder %s104, %s105
      %p119 = scmp.eq.s32.totalorder %s22, 1
      %p120 = por %p118, %p119
      %p122 = scmp.ne.s32.totalorder %s105, %s121
      %p123 = scmp.eq.s32.totalorder %s22, 0
      %p124 = por %p122, %p123
      %s125 = sadd.s32 %s24, %s25
      %s126 = sadd.s32 %s38, %s34
      %s127 = ssub.s32 %s23, %s42
      %s128 = ssub.s32 %s125, %s126
      %s129 = sor.u32 %s127, %s128
      %p130 = scmp.eq.s32.totalorder %s129, 0
      %s132 = sadd.s32 %s131, 1
      %s133 = scalar_select %p130, %s131, %s132
      %p136 = pneg %p130
      %p137 = scmp.eq.s32.totalorder %s16, 1
      %p138 = por %p136, %p137
      %p139 = scmp.ne.s32.totalorder %s131, %s134
      %p140 = scmp.eq.s32.totalorder %s16, 0
      %p141 = por %p139, %p140
      %p142 = scmp.ne.s32.totalorder %s131, %s134
      %p143 = scmp.eq.s32.totalorder %s21, 1
      %p144 = por %p142, %p143
      %p145 = scmp.ne.s32.totalorder %s134, %s135
      %p146 = scmp.eq.s32.totalorder %s21, 0
      %p147 = por %p145, %p146
      %p148 = scmp.ne.s32.totalorder %s134, %s135
      %p149 = scmp.eq.s32.totalorder %s22, 1
      %p150 = por %p148, %p149
      %p152 = scmp.ne.s32.totalorder %s135, %s151
      %p153 = scmp.eq.s32.totalorder %s22, 0
      %p154 = por %p152, %p153
      %p155 = scmp.le.s32.totalorder 1, %s16
      %p156 = scmp.lt.s32.totalorder %s16, 3
      %p157 = pnand %p155, %p156
      %p158 = pneg %p157
      // Predicated region
      $region9: #{tpu_custom_call.1} parent=5 // pred_check
        _
      $region10: #{tpu_custom_call.1} parent=5 // pred_check_branch
        %160 = sbr.rel (%p157) target = $region12
      $region11: #{tpu_custom_call.1} parent=5 // pred_region
        %s161 = ssub.s32 %s16, 1
        // Predicated region
        $region13: #{tpu_custom_call.1} parent=11 // pred_check
          %p162 = pneg %p61
        $region14: #{tpu_custom_call.1} parent=11 // pred_check_branch
          %164 = sbr.rel (%p162) target = $region16
        $region15: #{tpu_custom_call.1} parent=11 // pred_region
          %s166 = ssub.s32 128, 128
          %167 = vsyncadd [#allocation3], %s166
          %s168 = smul.addr %s26, 128
          %s169 = scalar_lea.hbm %s0, %s168
          %s171 = sshll.u32 [#allocation2], 4
          %s172 = int_to_ptr.vmem [resolvable:$true] %s171
          %174 = dma.hbm_to_vmem [thread:$0]  %s169, 128, %s172, [#allocation3]
        $region16: #{tpu_custom_call.1} parent=11 // pred_fallthru
          _
      $region12: #{tpu_custom_call.1} parent=5 // pred_fallthru
        _
      %p175 = scmp.lt.s32.totalorder %s16, 2
      // Predicated region
      $region17: #{tpu_custom_call.1} parent=5 // pred_check
        %p176 = pneg %p175
      $region18: #{tpu_custom_call.1} parent=5 // pred_check_branch
        %178 = sbr.rel (%p176) target = $region20
      $region19: #{tpu_custom_call.1} parent=5 // pred_region
        // Predicated region
        $region21: #{tpu_custom_call.1} parent=19 // pred_check
          %p179 = pneg %p83
        $region22: #{tpu_custom_call.1} parent=19 // pred_check_branch
          %181 = sbr.rel (%p179) target = $region24
        $region23: #{tpu_custom_call.1} parent=19 // pred_region
          %s182 = sand.u32 %s73, 1
          %s183 = scalar_lea.sflag [#allocation6], %s182
          %s184 = sand.u32 %s73, 1
          %s185 = smul.addr %s184, 64
          %s186 = scalar_lea.vmem [#allocation5], %s185
          %s188 = ssub.s32 1024, 1024
          %189 = vsyncadd %s183, %s188
          %s190 = smul.addr %s24, 8
          %s191 = sadd.s32 %s25, %s190
          %s192 = smul.addr %s191, 128
          %s193 = scalar_lea.hbm %s1, %s192
          %s194 = sshll.u32 %s186, 4
          %s195 = int_to_ptr.vmem [resolvable:$true] %s194
          %200 = dma.hbm_to_vmem [thread:$0]  %s193, 1024, %s195, %s183, 128, 128, 8
        $region24: #{tpu_custom_call.1} parent=19 // pred_fallthru
          _
        // Predicated region
        $region25: #{tpu_custom_call.1} parent=19 // pred_check
          %p201 = pneg %p111
        $region26: #{tpu_custom_call.1} parent=19 // pred_check_branch
          %203 = sbr.rel (%p201) target = $region28
        $region27: #{tpu_custom_call.1} parent=19 // pred_region
          %p204 = scmp.lt.s32.totalorder %s24, 1
          %s205 = scalar_select %p204, %s24, 1
          %p206 = scmp.lt.s32.totalorder %s25, 0
          %s207 = scalar_select %p206, %s25, 0
          %s208 = sadd.s32 %s207, %s205
          %s209 = scalar_lea.vmem %s2, %s208
        $region28: #{tpu_custom_call.1} parent=19 // pred_fallthru
          _
      $region20: #{tpu_custom_call.1} parent=5 // pred_fallthru
        _
      %p210 = scmp.le.s32.totalorder 1, %s16
      %p211 = scmp.lt.s32.totalorder %s16, 3
      %p212 = pnand %p210, %p211
      %p213 = pneg %p212
      // Predicated region
      $region29: #{tpu_custom_call.1} parent=5 // pred_check
        _
      $region30: #{tpu_custom_call.1} parent=5 // pred_check_branch
        %215 = sbr.rel (%p212) target = $region32
      $region31: #{tpu_custom_call.1} parent=5 // pred_region
        %s216 = ssub.s32 %s16, 1
        // Predicated region
        $region33: #{tpu_custom_call.1} parent=31 // pred_check
          %p217 = pneg %p61
        $region34: #{tpu_custom_call.1} parent=31 // pred_check_branch
          %219 = sbr.rel (%p217) target = $region36
        $region35: #{tpu_custom_call.1} parent=31 // pred_region
          %220 = dma.done [#allocation3], 128
        $region36: #{tpu_custom_call.1} parent=31 // pred_fallthru
          _
        %s221 = sand.u32 %s76, 1
        %s222 = scalar_lea.sflag [#allocation6], %s221
        %s223 = sand.u32 %s76, 1
        %s224 = smul.addr %s223, 64
        %s225 = scalar_lea.vmem [#allocation5], %s224
        // Predicated region
        $region37: #{tpu_custom_call.1} parent=31 // pred_check
          %p226 = pneg %p89
        $region38: #{tpu_custom_call.1} parent=31 // pred_check_branch
          %228 = sbr.rel (%p226) target = $region40
        $region39: #{tpu_custom_call.1} parent=31 // pred_region
          %229 = dma.done %s222, 1024
        $region40: #{tpu_custom_call.1} parent=31 // pred_fallthru
          _
        %p230 = pneg %p61
        %p231 = pneg %p58
        %s232 = sand.u32 %s76, 1
        %s233 = scalar_lea.sflag [#allocation6], %s232
        %s234 = sand.u32 %s76, 1
        %s235 = smul.addr %s234, 64
        %s236 = scalar_lea.vmem [#allocation5], %s235
        %p237 = pneg %p89
        %p238 = pneg %p86
        %p239 = scmp.lt.s32.totalorder %s27, 1
        %s240 = scalar_select %p239, %s27, 1
        %p241 = scmp.lt.s32.totalorder %s28, 0
        %s242 = scalar_select %p241, %s28, 0
        %s243 = sadd.s32 %s242, %s240
        %s244 = scalar_lea.vmem %s2, %s243
        %p245 = pneg %p117
        %p246 = pneg %p114
        %p247 = pneg %p147
        %p248 = pneg %p144
        %s249 = sand.u32 %s134, 1
        %s250 = scalar_lea.sflag [#allocation4], %s249
        %s251 = sand.u32 %s134, 1
        %s252 = smul.addr %s251, 8
        %s253 = scalar_lea.vmem [#allocation7], %s252
        %p254 = scmp.lt.s32.totalorder %s27, 1
        %s255 = scalar_select %p254, %s27, 1
        %p256 = scmp.lt.s32.totalorder %s28, 0
        %s257 = scalar_select %p256, %s28, 0
        %s258 = sadd.s32 %s257, %s255
        %s259 = scalar_lea.vmem %s2, %s258
        %s260 = sadd.s32 %s27, %s28
        %v261 = vld [vmem:[#allocation2] sm:$0xff]
        %v262 = vld [vmem:[%s225] sm:$0xff]
        %v263 = vld [vmem:[%s225 + $0x8] sm:$0xff]
        %v264 = vld [vmem:[%s225 + $0x10] sm:$0xff]
        %v265 = vld [vmem:[%s225 + $0x18] sm:$0xff]
        %v266 = vld [vmem:[%s225 + $0x20] sm:$0xff]
        %v267 = vld [vmem:[%s225 + $0x28] sm:$0xff]
        %v268 = vld [vmem:[%s225 + $0x30] sm:$0xff]
        %v269 = vld [vmem:[%s225 + $0x38] sm:$0xff]
        %v270 = vld [vmem:[%s259] sm:$0x1]
        %v272 = vlaneseq
        %v273 = vshrl.u32 %v272, 7
        %v274 = vsub.s32 0, %v273
        %v275 = vrot.slane %v270, %v274
        %vm277 = vcmask 523264
        %v279 = vsel %vm277, %v261, 0
        %281 = vmatprep.subr.mxu0 0.0
        %282 = vmatpush1.msra.mxu0 0.0
        %283 = vmatprep.subr.mxu0 0.0
        %284 = vmatpush1.msra.mxu0 0.0
        %285 = vmatprep.subr.mxu0 0.0
        %286 = vmatpush1.msra.mxu0 0.0
        %287 = vmatprep.subr.mxu0 0.0
        %288 = vmatpush1.msra.mxu0 0.0
        %289 = vmatprep.subr.mxu0 0.0
        %290 = vmatpush1.msra.mxu0 0.0
        %291 = vmatprep.subr.mxu0 0.0
        %292 = vmatpush1.msra.mxu0 0.0
        %293 = vmatprep.subr.mxu0 0.0
        %294 = vmatpush1.msra.mxu0 0.0
        %295 = vmatprep.subr.mxu0 0.0
        %296 = vmatpush1.msra.mxu0 0.0
        %297 = vmatprep.subr.mxu0 0.0
        %v298 = vand.u32 %v269, 4294901760
        %299 = vmatpush1.msra.mxu0 %v298
        %300 = vmatprep.subr.mxu0 0.0
        %v301 = vand.u32 %v268, 4294901760
        %302 = vmatpush1.msra.mxu0 %v301
        %303 = vmatprep.subr.mxu0 0.0
        %v304 = vand.u32 %v267, 4294901760
        %305 = vmatpush1.msra.mxu0 %v304
        %306 = vmatprep.subr.mxu0 0.0
        %v307 = vand.u32 %v266, 4294901760
        %308 = vmatpush1.msra.mxu0 %v307
        %309 = vmatprep.subr.mxu0 0.0
        %v310 = vand.u32 %v265, 4294901760
        %311 = vmatpush1.msra.mxu0 %v310
        %312 = vmatprep.subr.mxu0 0.0
        %v313 = vand.u32 %v264, 4294901760
        %314 = vmatpush1.msra.mxu0 %v313
        %315 = vmatprep.subr.mxu0 0.0
        %v316 = vand.u32 %v263, 4294901760
        %317 = vmatpush1.msra.mxu0 %v316
        %318 = vmatprep.subr.mxu0 0.0
        %v319 = vand.u32 %v262, 4294901760
        %320 = vmatpush1.msra.mxu0 %v319
        %321 = vmatprep.subr.mxu0 0.0
        %322 = vmatpush2.msra.mxu0 0.0
        %323 = vmatprep.subr.mxu0 0.0
        %324 = vmatpush2.msra.mxu0 0.0
        %325 = vmatprep.subr.mxu0 0.0
        %326 = vmatpush2.msra.mxu0 0.0
        %327 = vmatprep.subr.mxu0 0.0
        %328 = vmatpush2.msra.mxu0 0.0
        %329 = vmatprep.subr.mxu0 0.0
        %330 = vmatpush2.msra.mxu0 0.0
        %331 = vmatprep.subr.mxu0 0.0
        %332 = vmatpush2.msra.mxu0 0.0
        %333 = vmatprep.subr.mxu0 0.0
        %334 = vmatpush2.msra.mxu0 0.0
        %335 = vmatprep.subr.mxu0 0.0
        %336 = vmatpush2.msra.mxu0 0.0
        %337 = vmatprep.subr.mxu0 0.0
        %338 = vmatpush2.msra.mxu0 0.0
        %339 = vmatprep.subr.mxu0 0.0
        %340 = vmatpush2.msra.mxu0 0.0
        %341 = vmatprep.subr.mxu0 0.0
        %342 = vmatpush2.msra.mxu0 0.0
        %343 = vmatprep.subr.mxu0 0.0
        %344 = vmatpush2.msra.mxu0 0.0
        %345 = vmatprep.subr.mxu0 0.0
        %346 = vmatpush2.msra.mxu0 0.0
        %347 = vmatprep.subr.mxu0 0.0
        %348 = vmatpush2.msra.mxu0 0.0
        %349 = vmatprep.subr.mxu0 0.0
        %350 = vmatpush2.msra.mxu0 0.0
        %351 = vmatprep.subr.mxu0 0.0
        %352 = vmatpush2.msra.mxu0 0.0
        %353 = vmatprep.mubr.f32.mxu0 0.0
        %v354 = vand.u32 %v279, 4294901760
        %v355 = vsub.f32 %v279, %v354
        %v356 = vand.u32 %v355, 4294901760
        %v357 = vsub.f32 %v355, %v356
        %v358 = vand.u32 %v357, 4294901760
        %359 = vmatmul.mubr.f32.gmra.mxu0 %v358
        %v360 = vpop.f32.mrf.mxu0
        %v361 = vadd.f32 %v275, %v360
        %v362 = vpop.f32.mrf.mxu0
        %363 = vdwg.mxu0
        %364 = vmatprep.subr.mxu0 0.0
        %365 = vmatpush1.msra.mxu0 0.0
        %366 = vmatprep.subr.mxu0 0.0
        %367 = vmatpush1.msra.mxu0 0.0
        %368 = vmatprep.subr.mxu0 0.0
        %369 = vmatpush1.msra.mxu0 0.0
        %370 = vmatprep.subr.mxu0 0.0
        %371 = vmatpush1.msra.mxu0 0.0
        %372 = vmatprep.subr.mxu0 0.0
        %373 = vmatpush1.msra.mxu0 0.0
        %374 = vmatprep.subr.mxu0 0.0
        %375 = vmatpush1.msra.mxu0 0.0
        %376 = vmatprep.subr.mxu0 0.0
        %377 = vmatpush1.msra.mxu0 0.0
        %378 = vmatprep.subr.mxu0 0.0
        %379 = vmatpush1.msra.mxu0 0.0
        %380 = vmatprep.subr.mxu0 0.0
        %v381 = vand.u32 %v269, 4294901760
        %v382 = vsub.f32 %v269, %v381
        %v383 = vand.u32 %v382, 4294901760
        %v384 = vsub.f32 %v382, %v383
        %v385 = vand.u32 %v384, 4294901760
        %386 = vmatpush1.msra.mxu0 %v385
        %387 = vmatprep.subr.mxu0 0.0
        %v388 = vand.u32 %v268, 4294901760
        %v389 = vsub.f32 %v268, %v388
        %v390 = vand.u32 %v389, 4294901760
        %v391 = vsub.f32 %v389, %v390
        %v392 = vand.u32 %v391, 4294901760
        %393 = vmatpush1.msra.mxu0 %v392
        %394 = vmatprep.subr.mxu0 0.0
        %v395 = vand.u32 %v267, 4294901760
        %v396 = vsub.f32 %v267, %v395
        %v397 = vand.u32 %v396, 4294901760
        %v398 = vsub.f32 %v396, %v397
        %v399 = vand.u32 %v398, 4294901760
        %400 = vmatpush1.msra.mxu0 %v399
        %401 = vmatprep.subr.mxu0 0.0
        %v402 = vand.u32 %v266, 4294901760
        %v403 = vsub.f32 %v266, %v402
        %v404 = vand.u32 %v403, 4294901760
        %v405 = vsub.f32 %v403, %v404
        %v406 = vand.u32 %v405, 4294901760
        %407 = vmatpush1.msra.mxu0 %v406
        %408 = vmatprep.subr.mxu0 0.0
        %v409 = vand.u32 %v265, 4294901760
        %v410 = vsub.f32 %v265, %v409
        %v411 = vand.u32 %v410, 4294901760
        %v412 = vsub.f32 %v410, %v411
        %v413 = vand.u32 %v412, 4294901760
        %414 = vmatpush1.msra.mxu0 %v413
        %415 = vmatprep.subr.mxu0 0.0
        %v416 = vand.u32 %v264, 4294901760
        %v417 = vsub.f32 %v264, %v416
        %v418 = vand.u32 %v417, 4294901760
        %v419 = vsub.f32 %v417, %v418
        %v420 = vand.u32 %v419, 4294901760
        %421 = vmatpush1.msra.mxu0 %v420
        %422 = vmatprep.subr.mxu0 0.0
        %v423 = vand.u32 %v263, 4294901760
        %v424 = vsub.f32 %v263, %v423
        %v425 = vand.u32 %v424, 4294901760
        %v426 = vsub.f32 %v424, %v425
        %v427 = vand.u32 %v426, 4294901760
        %428 = vmatpush1.msra.mxu0 %v427
        %429 = vmatprep.subr.mxu0 0.0
        %v430 = vand.u32 %v262, 4294901760
        %v431 = vsub.f32 %v262, %v430
        %v432 = vand.u32 %v431, 4294901760
        %v433 = vsub.f32 %v431, %v432
        %v434 = vand.u32 %v433, 4294901760
        %435 = vmatpush1.msra.mxu0 %v434
        %436 = vmatprep.subr.mxu0 0.0
        %437 = vmatpush2.msra.mxu0 0.0
        %438 = vmatprep.subr.mxu0 0.0
        %439 = vmatpush2.msra.mxu0 0.0
        %440 = vmatprep.subr.mxu0 0.0
        %441 = vmatpush2.msra.mxu0 0.0
        %442 = vmatprep.subr.mxu0 0.0
        %443 = vmatpush2.msra.mxu0 0.0
        %444 = vmatprep.subr.mxu0 0.0
        %445 = vmatpush2.msra.mxu0 0.0
        %446 = vmatprep.subr.mxu0 0.0
        %447 = vmatpush2.msra.mxu0 0.0
        %448 = vmatprep.subr.mxu0 0.0
        %449 = vmatpush2.msra.mxu0 0.0
        %450 = vmatprep.subr.mxu0 0.0
        %451 = vmatpush2.msra.mxu0 0.0
        %452 = vmatprep.subr.mxu0 0.0
        %453 = vmatpush2.msra.mxu0 0.0
        %454 = vmatprep.subr.mxu0 0.0
        %455 = vmatpush2.msra.mxu0 0.0
        %456 = vmatprep.subr.mxu0 0.0
        %457 = vmatpush2.msra.mxu0 0.0
        %458 = vmatprep.subr.mxu0 0.0
        %459 = vmatpush2.msra.mxu0 0.0
        %460 = vmatprep.subr.mxu0 0.0
        %461 = vmatpush2.msra.mxu0 0.0
        %462 = vmatprep.subr.mxu0 0.0
        %463 = vmatpush2.msra.mxu0 0.0
        %464 = vmatprep.subr.mxu0 0.0
        %465 = vmatpush2.msra.mxu0 0.0
        %466 = vmatprep.subr.mxu0 0.0
        %467 = vmatpush2.msra.mxu0 0.0
        %468 = vmatprep.mubr.f32.mxu0 0.0
        %v469 = vand.u32 %v279, 4294901760
        %470 = vmatmul.mubr.f32.gmra.mxu0 %v469
        %v471 = vpop.f32.mrf.mxu0
        %v472 = vadd.f32 %v361, %v471
        %v473 = vpop.f32.mrf.mxu0
        %474 = vdwg.mxu0
        %475 = vmatprep.subr.mxu0 0.0
        %476 = vmatpush1.msra.mxu0 0.0
        %477 = vmatprep.subr.mxu0 0.0
        %478 = vmatpush1.msra.mxu0 0.0
        %479 = vmatprep.subr.mxu0 0.0
        %480 = vmatpush1.msra.mxu0 0.0
        %481 = vmatprep.subr.mxu0 0.0
        %482 = vmatpush1.msra.mxu0 0.0
        %483 = vmatprep.subr.mxu0 0.0
        %484 = vmatpush1.msra.mxu0 0.0
        %485 = vmatprep.subr.mxu0 0.0
        %486 = vmatpush1.msra.mxu0 0.0
        %487 = vmatprep.subr.mxu0 0.0
        %488 = vmatpush1.msra.mxu0 0.0
        %489 = vmatprep.subr.mxu0 0.0
        %490 = vmatpush1.msra.mxu0 0.0
        %491 = vmatprep.subr.mxu0 0.0
        %v492 = vand.u32 %v269, 4294901760
        %v493 = vsub.f32 %v269, %v492
        %494 = vmatpush1.msra.mxu0 %v493
        %495 = vmatprep.subr.mxu0 0.0
        %v496 = vand.u32 %v268, 4294901760
        %v497 = vsub.f32 %v268, %v496
        %498 = vmatpush1.msra.mxu0 %v497
        %499 = vmatprep.subr.mxu0 0.0
        %v500 = vand.u32 %v267, 4294901760
        %v501 = vsub.f32 %v267, %v500
        %502 = vmatpush1.msra.mxu0 %v501
        %503 = vmatprep.subr.mxu0 0.0
        %v504 = vand.u32 %v266, 4294901760
        %v505 = vsub.f32 %v266, %v504
        %506 = vmatpush1.msra.mxu0 %v505
        %507 = vmatprep.subr.mxu0 0.0
        %v508 = vand.u32 %v265, 4294901760
        %v509 = vsub.f32 %v265, %v508
        %510 = vmatpush1.msra.mxu0 %v509
        %511 = vmatprep.subr.mxu0 0.0
        %v512 = vand.u32 %v264, 4294901760
        %v513 = vsub.f32 %v264, %v512
        %514 = vmatpush1.msra.mxu0 %v513
        %515 = vmatprep.subr.mxu0 0.0
        %v516 = vand.u32 %v263, 4294901760
        %v517 = vsub.f32 %v263, %v516
        %518 = vmatpush1.msra.mxu0 %v517
        %519 = vmatprep.subr.mxu0 0.0
        %v520 = vand.u32 %v262, 4294901760
        %v521 = vsub.f32 %v262, %v520
        %522 = vmatpush1.msra.mxu0 %v521
        %523 = vmatprep.subr.mxu0 0.0
        %524 = vmatpush2.msra.mxu0 0.0
        %525 = vmatprep.subr.mxu0 0.0
        %526 = vmatpush2.msra.mxu0 0.0
        %527 = vmatprep.subr.mxu0 0.0
        %528 = vmatpush2.msra.mxu0 0.0
        %529 = vmatprep.subr.mxu0 0.0
        %530 = vmatpush2.msra.mxu0 0.0
        %531 = vmatprep.subr.mxu0 0.0
        %532 = vmatpush2.msra.mxu0 0.0
        %533 = vmatprep.subr.mxu0 0.0
        %534 = vmatpush2.msra.mxu0 0.0
        %535 = vmatprep.subr.mxu0 0.0
        %536 = vmatpush2.msra.mxu0 0.0
        %537 = vmatprep.subr.mxu0 0.0
        %538 = vmatpush2.msra.mxu0 0.0
        %539 = vmatprep.subr.mxu0 0.0
        %540 = vmatpush2.msra.mxu0 0.0
        %541 = vmatprep.subr.mxu0 0.0
        %542 = vmatpush2.msra.mxu0 0.0
        %543 = vmatprep.subr.mxu0 0.0
        %544 = vmatpush2.msra.mxu0 0.0
        %545 = vmatprep.subr.mxu0 0.0
        %546 = vmatpush2.msra.mxu0 0.0
        %547 = vmatprep.subr.mxu0 0.0
        %548 = vmatpush2.msra.mxu0 0.0
        %549 = vmatprep.subr.mxu0 0.0
        %550 = vmatpush2.msra.mxu0 0.0
        %551 = vmatprep.subr.mxu0 0.0
        %552 = vmatpush2.msra.mxu0 0.0
        %553 = vmatprep.subr.mxu0 0.0
        %554 = vmatpush2.msra.mxu0 0.0
        %555 = vmatprep.mubr.f32.mxu0 0.0
        %v556 = vand.u32 %v279, 4294901760
        %v557 = vsub.f32 %v279, %v556
        %558 = vmatmul.mubr.f32.gmra.mxu0 %v557
        %v559 = vpop.f32.mrf.mxu0
        %v560 = vadd.f32 %v472, %v559
        %v561 = vpop.f32.mrf.mxu0
        %562 = vdwg.mxu0
        %563 = vmatprep.subr.mxu0 0.0
        %564 = vmatpush1.msra.mxu0 0.0
        %565 = vmatprep.subr.mxu0 0.0
        %566 = vmatpush1.msra.mxu0 0.0
        %567 = vmatprep.subr.mxu0 0.0
        %568 = vmatpush1.msra.mxu0 0.0
        %569 = vmatprep.subr.mxu0 0.0
        %570 = vmatpush1.msra.mxu0 0.0
        %571 = vmatprep.subr.mxu0 0.0
        %572 = vmatpush1.msra.mxu0 0.0
        %573 = vmatprep.subr.mxu0 0.0
        %574 = vmatpush1.msra.mxu0 0.0
        %575 = vmatprep.subr.mxu0 0.0
        %576 = vmatpush1.msra.mxu0 0.0
        %577 = vmatprep.subr.mxu0 0.0
        %578 = vmatpush1.msra.mxu0 0.0
        %579 = vmatprep.subr.mxu0 0.0
        %v580 = vand.u32 %v269, 4294901760
        %581 = vmatpush1.msra.mxu0 %v580
        %582 = vmatprep.subr.mxu0 0.0
        %v583 = vand.u32 %v268, 4294901760
        %584 = vmatpush1.msra.mxu0 %v583
        %585 = vmatprep.subr.mxu0 0.0
        %v586 = vand.u32 %v267, 4294901760
        %587 = vmatpush1.msra.mxu0 %v586
        %588 = vmatprep.subr.mxu0 0.0
        %v589 = vand.u32 %v266, 4294901760
        %590 = vmatpush1.msra.mxu0 %v589
        %591 = vmatprep.subr.mxu0 0.0
        %v592 = vand.u32 %v265, 4294901760
        %593 = vmatpush1.msra.mxu0 %v592
        %594 = vmatprep.subr.mxu0 0.0
        %v595 = vand.u32 %v264, 4294901760
        %596 = vmatpush1.msra.mxu0 %v595
        %597 = vmatprep.subr.mxu0 0.0
        %v598 = vand.u32 %v263, 4294901760
        %599 = vmatpush1.msra.mxu0 %v598
        %600 = vmatprep.subr.mxu0 0.0
        %v601 = vand.u32 %v262, 4294901760
        %602 = vmatpush1.msra.mxu0 %v601
        %603 = vmatprep.subr.mxu0 0.0
        %604 = vmatpush2.msra.mxu0 0.0
        %605 = vmatprep.subr.mxu0 0.0
        %606 = vmatpush2.msra.mxu0 0.0
        %607 = vmatprep.subr.mxu0 0.0
        %608 = vmatpush2.msra.mxu0 0.0
        %609 = vmatprep.subr.mxu0 0.0
        %610 = vmatpush2.msra.mxu0 0.0
        %611 = vmatprep.subr.mxu0 0.0
        %612 = vmatpush2.msra.mxu0 0.0
        %613 = vmatprep.subr.mxu0 0.0
        %614 = vmatpush2.msra.mxu0 0.0
        %615 = vmatprep.subr.mxu0 0.0
        %616 = vmatpush2.msra.mxu0 0.0
        %617 = vmatprep.subr.mxu0 0.0
        %618 = vmatpush2.msra.mxu0 0.0
        %619 = vmatprep.subr.mxu0 0.0
        %620 = vmatpush2.msra.mxu0 0.0
        %621 = vmatprep.subr.mxu0 0.0
        %622 = vmatpush2.msra.mxu0 0.0
        %623 = vmatprep.subr.mxu0 0.0
        %624 = vmatpush2.msra.mxu0 0.0
        %625 = vmatprep.subr.mxu0 0.0
        %626 = vmatpush2.msra.mxu0 0.0
        %627 = vmatprep.subr.mxu0 0.0
        %628 = vmatpush2.msra.mxu0 0.0
        %629 = vmatprep.subr.mxu0 0.0
        %630 = vmatpush2.msra.mxu0 0.0
        %631 = vmatprep.subr.mxu0 0.0
        %632 = vmatpush2.msra.mxu0 0.0
        %633 = vmatprep.subr.mxu0 0.0
        %634 = vmatpush2.msra.mxu0 0.0
        %635 = vmatprep.mubr.f32.mxu0 0.0
        %v636 = vand.u32 %v279, 4294901760
        %v637 = vsub.f32 %v279, %v636
        %v638 = vand.u32 %v637, 4294901760
        %639 = vmatmul.mubr.f32.gmra.mxu0 %v638
        %v640 = vpop.f32.mrf.mxu0
        %v641 = vadd.f32 %v560, %v640
        %v642 = vpop.f32.mrf.mxu0
        %643 = vdwg.mxu0
        %644 = vmatprep.subr.mxu0 0.0
        %645 = vmatpush1.msra.mxu0 0.0
        %646 = vmatprep.subr.mxu0 0.0
        %647 = vmatpush1.msra.mxu0 0.0
        %648 = vmatprep.subr.mxu0 0.0
        %649 = vmatpush1.msra.mxu0 0.0
        %650 = vmatprep.subr.mxu0 0.0
        %651 = vmatpush1.msra.mxu0 0.0
        %652 = vmatprep.subr.mxu0 0.0
        %653 = vmatpush1.msra.mxu0 0.0
        %654 = vmatprep.subr.mxu0 0.0
        %655 = vmatpush1.msra.mxu0 0.0
        %656 = vmatprep.subr.mxu0 0.0
        %657 = vmatpush1.msra.mxu0 0.0
        %658 = vmatprep.subr.mxu0 0.0
        %659 = vmatpush1.msra.mxu0 0.0
        %660 = vmatprep.subr.mxu0 0.0
        %v661 = vand.u32 %v269, 4294901760
        %v662 = vsub.f32 %v269, %v661
        %v663 = vand.u32 %v662, 4294901760
        %664 = vmatpush1.msra.mxu0 %v663
        %665 = vmatprep.subr.mxu0 0.0
        %v666 = vand.u32 %v268, 4294901760
        %v667 = vsub.f32 %v268, %v666
        %v668 = vand.u32 %v667, 4294901760
        %669 = vmatpush1.msra.mxu0 %v668
        %670 = vmatprep.subr.mxu0 0.0
        %v671 = vand.u32 %v267, 4294901760
        %v672 = vsub.f32 %v267, %v671
        %v673 = vand.u32 %v672, 4294901760
        %674 = vmatpush1.msra.mxu0 %v673
        %675 = vmatprep.subr.mxu0 0.0
        %v676 = vand.u32 %v266, 4294901760
        %v677 = vsub.f32 %v266, %v676
        %v678 = vand.u32 %v677, 4294901760
        %679 = vmatpush1.msra.mxu0 %v678
        %680 = vmatprep.subr.mxu0 0.0
        %v681 = vand.u32 %v265, 4294901760
        %v682 = vsub.f32 %v265, %v681
        %v683 = vand.u32 %v682, 4294901760
        %684 = vmatpush1.msra.mxu0 %v683
        %685 = vmatprep.subr.mxu0 0.0
        %v686 = vand.u32 %v264, 4294901760
        %v687 = vsub.f32 %v264, %v686
        %v688 = vand.u32 %v687, 4294901760
        %689 = vmatpush1.msra.mxu0 %v688
        %690 = vmatprep.subr.mxu0 0.0
        %v691 = vand.u32 %v263, 4294901760
        %v692 = vsub.f32 %v263, %v691
        %v693 = vand.u32 %v692, 4294901760
        %694 = vmatpush1.msra.mxu0 %v693
        %695 = vmatprep.subr.mxu0 0.0
        %v696 = vand.u32 %v262, 4294901760
        %v697 = vsub.f32 %v262, %v696
        %v698 = vand.u32 %v697, 4294901760
        %699 = vmatpush1.msra.mxu0 %v698
        %700 = vmatprep.subr.mxu0 0.0
        %701 = vmatpush2.msra.mxu0 0.0
        %702 = vmatprep.subr.mxu0 0.0
        %703 = vmatpush2.msra.mxu0 0.0
        %704 = vmatprep.subr.mxu0 0.0
        %705 = vmatpush2.msra.mxu0 0.0
        %706 = vmatprep.subr.mxu0 0.0
        %707 = vmatpush2.msra.mxu0 0.0
        %708 = vmatprep.subr.mxu0 0.0
        %709 = vmatpush2.msra.mxu0 0.0
        %710 = vmatprep.subr.mxu0 0.0
        %711 = vmatpush2.msra.mxu0 0.0
        %712 = vmatprep.subr.mxu0 0.0
        %713 = vmatpush2.msra.mxu0 0.0
        %714 = vmatprep.subr.mxu0 0.0
        %715 = vmatpush2.msra.mxu0 0.0
        %716 = vmatprep.subr.mxu0 0.0
        %717 = vmatpush2.msra.mxu0 0.0
        %718 = vmatprep.subr.mxu0 0.0
        %719 = vmatpush2.msra.mxu0 0.0
        %720 = vmatprep.subr.mxu0 0.0
        %721 = vmatpush2.msra.mxu0 0.0
        %722 = vmatprep.subr.mxu0 0.0
        %723 = vmatpush2.msra.mxu0 0.0
        %724 = vmatprep.subr.mxu0 0.0
        %725 = vmatpush2.msra.mxu0 0.0
        %726 = vmatprep.subr.mxu0 0.0
        %727 = vmatpush2.msra.mxu0 0.0
        %728 = vmatprep.subr.mxu0 0.0
        %729 = vmatpush2.msra.mxu0 0.0
        %730 = vmatprep.subr.mxu0 0.0
        %731 = vmatpush2.msra.mxu0 0.0
        %732 = vmatprep.mubr.f32.mxu0 0.0
        %v733 = vand.u32 %v279, 4294901760
        %734 = vmatmul.mubr.f32.gmra.mxu0 %v733
        %v735 = vpop.f32.mrf.mxu0
        %v736 = vadd.f32 %v641, %v735
        %v737 = vpop.f32.mrf.mxu0
        %738 = vdwg.mxu0
        %739 = vmatprep.subr.mxu0 0.0
        %740 = vmatpush1.msra.mxu0 0.0
        %741 = vmatprep.subr.mxu0 0.0
        %742 = vmatpush1.msra.mxu0 0.0
        %743 = vmatprep.subr.mxu0 0.0
        %744 = vmatpush1.msra.mxu0 0.0
        %745 = vmatprep.subr.mxu0 0.0
        %746 = vmatpush1.msra.mxu0 0.0
        %747 = vmatprep.subr.mxu0 0.0
        %748 = vmatpush1.msra.mxu0 0.0
        %749 = vmatprep.subr.mxu0 0.0
        %750 = vmatpush1.msra.mxu0 0.0
        %751 = vmatprep.subr.mxu0 0.0
        %752 = vmatpush1.msra.mxu0 0.0
        %753 = vmatprep.subr.mxu0 0.0
        %754 = vmatpush1.msra.mxu0 0.0
        %755 = vmatprep.subr.mxu0 0.0
        %v756 = vand.u32 %v269, 4294901760
        %757 = vmatpush1.msra.mxu0 %v756
        %758 = vmatprep.subr.mxu0 0.0
        %v759 = vand.u32 %v268, 4294901760
        %760 = vmatpush1.msra.mxu0 %v759
        %761 = vmatprep.subr.mxu0 0.0
        %v762 = vand.u32 %v267, 4294901760
        %763 = vmatpush1.msra.mxu0 %v762
        %764 = vmatprep.subr.mxu0 0.0
        %v765 = vand.u32 %v266, 4294901760
        %766 = vmatpush1.msra.mxu0 %v765
        %767 = vmatprep.subr.mxu0 0.0
        %v768 = vand.u32 %v265, 4294901760
        %769 = vmatpush1.msra.mxu0 %v768
        %770 = vmatprep.subr.mxu0 0.0
        %v771 = vand.u32 %v264, 4294901760
        %772 = vmatpush1.msra.mxu0 %v771
        %773 = vmatprep.subr.mxu0 0.0
        %v774 = vand.u32 %v263, 4294901760
        %775 = vmatpush1.msra.mxu0 %v774
        %776 = vmatprep.subr.mxu0 0.0
        %v777 = vand.u32 %v262, 4294901760
        %778 = vmatpush1.msra.mxu0 %v777
        %779 = vmatprep.subr.mxu0 0.0
        %780 = vmatpush2.msra.mxu0 0.0
        %781 = vmatprep.subr.mxu0 0.0
        %782 = vmatpush2.msra.mxu0 0.0
        %783 = vmatprep.subr.mxu0 0.0
        %784 = vmatpush2.msra.mxu0 0.0
        %785 = vmatprep.subr.mxu0 0.0
        %786 = vmatpush2.msra.mxu0 0.0
        %787 = vmatprep.subr.mxu0 0.0
        %788 = vmatpush2.msra.mxu0 0.0
        %789 = vmatprep.subr.mxu0 0.0
        %790 = vmatpush2.msra.mxu0 0.0
        %791 = vmatprep.subr.mxu0 0.0
        %792 = vmatpush2.msra.mxu0 0.0
        %793 = vmatprep.subr.mxu0 0.0
        %794 = vmatpush2.msra.mxu0 0.0
        %795 = vmatprep.subr.mxu0 0.0
        %796 = vmatpush2.msra.mxu0 0.0
        %797 = vmatprep.subr.mxu0 0.0
        %798 = vmatpush2.msra.mxu0 0.0
        %799 = vmatprep.subr.mxu0 0.0
        %800 = vmatpush2.msra.mxu0 0.0
        %801 = vmatprep.subr.mxu0 0.0
        %802 = vmatpush2.msra.mxu0 0.0
        %803 = vmatprep.subr.mxu0 0.0
        %804 = vmatpush2.msra.mxu0 0.0
        %805 = vmatprep.subr.mxu0 0.0
        %806 = vmatpush2.msra.mxu0 0.0
        %807 = vmatprep.subr.mxu0 0.0
        %808 = vmatpush2.msra.mxu0 0.0
        %809 = vmatprep.subr.mxu0 0.0
        %810 = vmatpush2.msra.mxu0 0.0
        %811 = vmatprep.mubr.f32.mxu0 0.0
        %v812 = vand.u32 %v279, 4294901760
        %813 = vmatmul.mubr.f32.gmra.mxu0 %v812
        %v814 = vpop.f32.mrf.mxu0
        %v815 = vadd.f32 %v736, %v814
        %v816 = vpop.f32.mrf.mxu0
        %817 = vdwg.mxu0
        %818 = vst [vmem:[%s253] sm:$0xff] %v815
        %s819 = sand.u32 %s134, 1
        %s820 = scalar_lea.sflag [#allocation4], %s819
        %s821 = sand.u32 %s134, 1
        %s822 = smul.addr %s821, 8
        %s823 = scalar_lea.vmem [#allocation7], %s822
        // Predicated region
        $region41: #{tpu_custom_call.1} parent=31 // pred_check
          %p824 = pneg %p144
        $region42: #{tpu_custom_call.1} parent=31 // pred_check_branch
          %826 = sbr.rel (%p824) target = $region44
        $region43: #{tpu_custom_call.1} parent=31 // pred_region
          %s827 = sadd.s32 %s27, %s28
          %s829 = ssub.s32 128, 128
          %830 = vsyncadd %s820, %s829
          %s831 = smul.addr %s26, 2
          %s832 = sadd.s32 %s827, %s831
          %s833 = smul.addr %s832, 128
          %s834 = scalar_lea.hbm %s3, %s833
          %s836 = sshll.u32 %s823, 4
          %s837 = int_to_ptr.vmem [resolvable:$true] %s836
          %839 = dma.vmem_to_hbm [thread:$0]  %s837, 128, %s834, %s820
        $region44: #{tpu_custom_call.1} parent=31 // pred_fallthru
          _
      $region32: #{tpu_custom_call.1} parent=5 // pred_fallthru
        _
      %p840 = scmp.le.s32.totalorder 2, %s16
      // Predicated region
      $region45: #{tpu_custom_call.1} parent=5 // pred_check
        %p841 = pneg %p840
      $region46: #{tpu_custom_call.1} parent=5 // pred_check_branch
        %843 = sbr.rel (%p841) target = $region48
      $region47: #{tpu_custom_call.1} parent=5 // pred_region
        %s844 = ssub.s32 %s16, 2
        // Predicated region
        $region49: #{tpu_custom_call.1} parent=47 // pred_check
          %p845 = pneg %p150
        $region50: #{tpu_custom_call.1} parent=47 // pred_check_branch
          %847 = sbr.rel (%p845) target = $region52
        $region51: #{tpu_custom_call.1} parent=47 // pred_region
          %s848 = sand.u32 %s135, 1
          %s849 = scalar_lea.sflag [#allocation4], %s848
          %s850 = sand.u32 %s135, 1
          %s851 = smul.addr %s850, 8
          %s852 = scalar_lea.vmem [#allocation7], %s851
          %853 = dma.done %s849, 128
        $region52: #{tpu_custom_call.1} parent=47 // pred_fallthru
          _
      $region48: #{tpu_custom_call.1} parent=5 // pred_fallthru
        _
    $region6: #{tpu_custom_call.1} parent=1 // loop_footer
      %s20 = sadd.s32 1, %s16
    $region7: #{tpu_custom_call.1} parent=1 // loop_footer_branch
      %15 = sbr.rel target = $region3
    $region8: #{tpu_custom_call.1} parent=1 // loop_exit
      _
    %854 = vsyncpa [#allocation3], 1
    %s855 = scalar_lea.sflag [#allocation3], 1
    %856 = vsyncpa %s855, 1
    %857 = vsyncpa [#allocation6], 1
    %s858 = scalar_lea.sflag [#allocation6], 1
    %859 = vsyncpa %s858, 1
    %860 = vsyncpa [#allocation4], 1
    %s861 = scalar_lea.sflag [#allocation4], 1
    %862 = vsyncpa %s861, 1

</llo_original>
